<compile_context>
chip_gen: v7x
topology: tpu7x:2x2x1
jax: 0.10.0
libtpu: 0.0.40
codegen_flags: <defaults>
</compile_context>

<pallas_src>
import functools
import numpy as np

import jax
import jax.numpy as jnp
from jax import lax
from jax.experimental import pallas as pl
from jax.experimental.pallas import tpu as pltpu


def _round_up(x, m):
    return (x + m - 1) // m * m


# -----------------------------------------------------------------------------
# Batch-invariant Gabor filter bank (exactly the PyTorch module's formula).
# Plain jnp in the wrapper: tiny (OC, C, ke, ke) EUP/VPU work, done once.
# -----------------------------------------------------------------------------
def gabor_weights(sigma, theta, lamda, gamma, psi, kernel_size):
    half = kernel_size // 2
    yg, xg = np.mgrid[-half:half + 1, -half:half + 1]
    xg = jnp.asarray(xg, jnp.float32)[None, None]          # (1,1,ke,ke)
    yg = jnp.asarray(yg, jnp.float32)[None, None]
    sx = sigma[:, :, None, None]
    sy = (sigma / gamma)[:, :, None, None]
    th = (theta - np.pi)[:, :, None, None]
    rx = xg * jnp.cos(th) + yg * jnp.sin(th)
    ry = -xg * jnp.sin(th) + yg * jnp.cos(th)
    g = jnp.exp(-0.5 * (rx * rx / (sx * sx) + ry * ry / (sy * sy)))
    g = g / (2.0 * np.pi * sx * sy)
    return g * jnp.cos(2.0 * np.pi / lamda[:, :, None, None] * rx
                       + psi[:, :, None, None])             # (OC, C, ke, ke) f32


# -----------------------------------------------------------------------------
# Fused conv kernel: one grid step == one batch element.
# -----------------------------------------------------------------------------
def _gabor_conv_kernel(w_ref, bias_ref, x_ref, o_ref, panel_ref, *,
                       offsets, c, out_len_pad):
    """
    w_ref     : (OC, K*K*C)       bf16 packed filter bank (tap-major, channel-minor).
    bias_ref  : (OC, 1)           f32 (zeros when the module has bias=False).
    x_ref     : (C, L)            bf16 zero-padded image, spatially flattened.
    o_ref     : (OC, OUT_PAD)     f32 "wide" output rows (OH rows of WP cols, lane-padded).
    panel_ref : (K*K*C, OUT_PAD)  f32 VMEM scratch: im2col panel.
    offsets   : static tuple of K*K flat tap offsets.
    """
    # Assemble the im2col panel from K*K statically-offset lane views of the
    # VMEM-resident image.  Each piece is a small (C, OUT_PAD) masked sublane
    # store — no HBM im2col blow-up.
    for t, off in enumerate(offsets):
        panel_ref[t * c:(t + 1) * c, :] = (
            x_ref[:, off:off + out_len_pad].astype(jnp.float32))

    # One stacked-contraction MXU matmul: bf16 feed, f32 accumulation.
    # (bf16 -> f32 -> bf16 round trip is exact since x arrived as bf16.)
    panel = panel_ref[...].astype(jnp.bfloat16)
    acc = jnp.dot(w_ref[...], panel, preferred_element_type=jnp.float32)

    o_ref[...] = (acc + bias_ref[...]).astype(o_ref.dtype)   # fused bias (broadcast)


# -----------------------------------------------------------------------------
# Forward pass: NCHW conv2d with the generated Gabor filter bank.
# -----------------------------------------------------------------------------
def gabor2d_forward(x, sigma, theta, lamda, gamma, psi, kernel_size,
                    stride=1, padding=0, dilation=1, bias=None):
    n, c, h, w = x.shape
    oc = sigma.shape[0]

    # Effective kernel geometry: the module's mgrid always spans
    # (2*floor(k/2)+1)^2 points, so even kernel_size behaves like k+1.
    half = kernel_size // 2
    ke = 2 * half + 1
    kk = ke * ke

    hp = h + 2 * padding
    wp = w + 2 * padding
    span = dilation * (ke - 1)
    assert hp - span >= 1 and wp - span >= 1, "kernel larger than padded input"

    oh1 = hp - span                       # stride-1 output rows
    out_len = oh1 * wp                    # wide rows: WP cols each, first OW1 valid
    out_len_pad = _round_up(out_len, 128)  # lane-dense, fully unmasked output stores

    # Static per-tap flat offsets (row-major over the (ke, ke) kernel grid).
    offsets = tuple(i * dilation * wp + j * dilation
                    for i in range(ke) for j in range(ke))
    max_off = offsets[-1]

    # One pad op does the spatial zero-padding AND adds the flat-tail slack
    # rows needed so every shifted lane view x[:, off:off+OUT_PAD] is in bounds.
    extra = max(0, max_off + out_len_pad - hp * wp)
    extra_rows = -(-extra // wp)
    x_pad = jnp.pad(x, ((0, 0), (0, 0),
                        (padding, padding + extra_rows),
                        (padding, padding)))
    l = (hp + extra_rows) * wp
    # bf16 input: halves HBM->VMEM DMA bytes / VMEM footprint; accum stays f32.
    x_flat = x_pad.reshape(n, c, l).astype(jnp.bfloat16)

    # Batch-invariant filter bank, packed so column (t*C + ch) matches the
    # panel row layout (tap-major, channel-minor).
    w4 = gabor_weights(sigma, theta, lamda, gamma, psi, kernel_size)
    w_all = jnp.transpose(w4, (0, 2, 3, 1)).reshape(oc, kk * c).astype(jnp.bfloat16)

    bias_col = (jnp.zeros((oc, 1), jnp.float32) if bias is None
                else bias.reshape(oc, 1).astype(jnp.float32))

    kernel = functools.partial(_gabor_conv_kernel, offsets=offsets, c=c,
                               out_len_pad=out_len_pad)

    # TODO(synk): for large images, add a second ("parallel") grid axis tiling
    # the output rows; budget input+output double buffers against v7x's 64 MiB
    # physical / 32 MiB default scoped VMEM (set vmem_limit_bytes), and fold the
    # zero padding into the kernel (DMA unpadded rows into a zero-filled VMEM
    # scratch via memory_space=pl.ANY) instead of materializing x_pad in HBM.
    # Only raise pipeline depth (pl.Buffered) if DMA latency is actually exposed.
    # TODO(synk): on single-TC v5e/v6e with tiny N and images, fold the batch
    # into the lane dimension (one grid step over (C, N*L)) to amortize the
    # ~0.35 us per-step fixed cost; keep grid=(N,) on v7x so both cores get work.
    out_wide = pl.pallas_call(
        kernel,
        out_shape=jax.ShapeDtypeStruct((n, oc, out_len_pad), jnp.float32),
        grid_spec=pltpu.PrefetchScalarGridSpec(
            num_scalar_prefetch=0,
            grid=(n,),
            in_specs=[
                pl.BlockSpec((oc, kk * c), lambda i: (0, 0)),     # packed weights
                pl.BlockSpec((oc, 1), lambda i: (0, 0)),          # bias
                pl.BlockSpec((None, c, l), lambda i: (i, 0, 0)),  # one image
            ],
            out_specs=pl.BlockSpec((None, oc, out_len_pad), lambda i: (i, 0, 0)),
            scratch_shapes=[pltpu.VMEM((kk * c, out_len_pad), jnp.float32)],
        ),
        compiler_params=pltpu.CompilerParams(
            dimension_semantics=("parallel",)),
    )(w_all, bias_col, x_flat)

    # Layout epilogue: cheap slice of the lane pad + free reshape + valid-column
    # slice.  Output is already NCHW-ordered and lane-dense; no transpose pass.
    oh = (hp - span - 1) // stride + 1
    ow = (wp - span - 1) // stride + 1
    out = out_wide[:, :, :out_len].reshape(n, oc, oh1, wp)
    # stride > 1 realized by subsampling the stride-1 result (correct; default
    # path is stride=1 so no wasted compute there).
    out = out[:, :, ::stride, ::stride][:, :, :oh, :ow]
    return out


# -----------------------------------------------------------------------------
if __name__ == "__main__":
    # Mirrors Gabor2D(in_channels=4, out_channels=8, kernel_size=3,
    #                 stride=1, padding=1, dilation=1, bias=False).
    in_channels, out_channels, kernel_size = 4, 8, 3
    stride, padding, dilation = 1, 1, 1

    key = jax.random.PRNGKey(0)
    k_sig, k_th, k_lam, k_gam, k_psi, k_x = jax.random.split(key, 6)

    # Deterministic parameter init matching reset_parameters().
    sigma = 5.0 + 1.5 * jax.random.normal(k_sig, (out_channels, in_channels), jnp.float32)
    theta = jax.random.uniform(k_th, (out_channels, in_channels), jnp.float32, 0.0, 1.0)
    lamda = 5.0 + 1.5 * jax.random.normal(k_lam, (out_channels, in_channels), jnp.float32)
    gamma = 1.5 + 0.4 * jax.random.normal(k_gam, (out_channels, in_channels), jnp.float32)
    psi = jax.random.uniform(k_psi, (out_channels, in_channels), jnp.float32, 0.0, 1.0)

    x = jax.random.normal(k_x, (2, in_channels, 16, 16), jnp.float32)

    out = gabor2d_forward(x, sigma, theta, lamda, gamma, psi, kernel_size,
                          stride=stride, padding=padding, dilation=dilation)
    out = jax.block_until_ready(out)

    # Reference check: plain-JAX f32 Gabor weights + XLA conv.  The kernel feeds
    # the MXU bf16 inputs (f32 accumulation), so tolerances reflect bf16 input
    # quantization (~2^-9 relative per operand over a 36-term contraction).
    ref = lax.conv_general_dilated(
        x, gabor_weights(sigma, theta, lamda, gamma, psi, kernel_size),
        window_strides=(stride, stride),
        padding=[(padding, padding), (padding, padding)],
        rhs_dilation=(dilation, dilation),
        dimension_numbers=("NCHW", "OIHW", "NCHW"))
    np.testing.assert_allclose(np.asarray(out), np.asarray(ref),
                               rtol=2e-2, atol=5e-3)

    print("KERNEL_OK")
</pallas_src>

<mosaic_0001>
module attributes {stable_mosaic.version = 11 : i64} {
  func.func @_gabor_conv_kernel(%arg0: i32, %arg1: memref<8x36xbf16, #tpu.memory_space<vmem>>, %arg2: memref<8x1xf32, #tpu.memory_space<vmem>>, %arg3: memref<1x4x432xbf16, #tpu.memory_space<vmem>>, %arg4: memref<1x8x384xf32, #tpu.memory_space<vmem>>, %arg5: memref<36x384xf32, #tpu.memory_space<vmem>>) attributes {dimension_semantics = [#tpu.dimension_semantics<parallel>], iteration_bounds = array<i64: 2>, scalar_prefetch = 0 : i64, scratch_operands = 1 : i64, tpu.core_type = #tpu.core_type<tc>, window_params = [{pipeline_mode = #tpu.pipeline_mode<synchronous>, transform_indices = @transform_0, window_bounds = array<i64: 8, 36>}, {pipeline_mode = #tpu.pipeline_mode<synchronous>, transform_indices = @transform_1, window_bounds = array<i64: 8, 1>}, {transform_indices = @transform_2, window_bounds = array<i64: 1, 4, 432>}, {transform_indices = @transform_3, window_bounds = array<i64: 1, 8, 384>}]} {
    %c0 = arith.constant 0 : index
    %c0_0 = arith.constant 0 : index
    %c0_1 = arith.constant 0 : index
    %0 = vector.load %arg3[%c0, %c0_0, %c0_1] : memref<1x4x432xbf16, #tpu.memory_space<vmem>>, vector<1x4x384xbf16>
    %1 = vector.shape_cast %0 : vector<1x4x384xbf16> to vector<4x384xbf16>
    %2 = arith.extf %1 : vector<4x384xbf16> to vector<4x384xf32>
    %c0_2 = arith.constant 0 : index
    %c0_3 = arith.constant 0 : index
    %3 = vector.load %arg5[%c0_2, %c0_3] : memref<36x384xf32, #tpu.memory_space<vmem>>, vector<4x384xf32>
    tpu.vector_store %arg5[%c0_2, %c0_3], %2 {strides = array<i32>} : memref<36x384xf32, #tpu.memory_space<vmem>>, vector<4x384xf32>,
    %c0_4 = arith.constant 0 : index
    %c0_5 = arith.constant 0 : index
    %c1 = arith.constant 1 : index
    %4 = vector.load %arg3[%c0_4, %c0_5, %c1] : memref<1x4x432xbf16, #tpu.memory_space<vmem>>, vector<1x4x384xbf16>
    %5 = vector.shape_cast %4 : vector<1x4x384xbf16> to vector<4x384xbf16>
    %6 = arith.extf %5 : vector<4x384xbf16> to vector<4x384xf32>
    %c4 = arith.constant 4 : index
    %c0_6 = arith.constant 0 : index
    %7 = vector.load %arg5[%c4, %c0_6] : memref<36x384xf32, #tpu.memory_space<vmem>>, vector<4x384xf32>
    tpu.vector_store %arg5[%c4, %c0_6], %6 {strides = array<i32>} : memref<36x384xf32, #tpu.memory_space<vmem>>, vector<4x384xf32>,
    %c0_7 = arith.constant 0 : index
    %c0_8 = arith.constant 0 : index
    %c2 = arith.constant 2 : index
    %8 = vector.load %arg3[%c0_7, %c0_8, %c2] : memref<1x4x432xbf16, #tpu.memory_space<vmem>>, vector<1x4x384xbf16>
    %9 = vector.shape_cast %8 : vector<1x4x384xbf16> to vector<4x384xbf16>
    %10 = arith.extf %9 : vector<4x384xbf16> to vector<4x384xf32>
    %c8 = arith.constant 8 : index
    %c0_9 = arith.constant 0 : index
    %11 = vector.load %arg5[%c8, %c0_9] : memref<36x384xf32, #tpu.memory_space<vmem>>, vector<4x384xf32>
    tpu.vector_store %arg5[%c8, %c0_9], %10 {strides = array<i32>} : memref<36x384xf32, #tpu.memory_space<vmem>>, vector<4x384xf32>,
    %c0_10 = arith.constant 0 : index
    %c0_11 = arith.constant 0 : index
    %c18 = arith.constant 18 : index
    %12 = vector.load %arg3[%c0_10, %c0_11, %c18] : memref<1x4x432xbf16, #tpu.memory_space<vmem>>, vector<1x4x384xbf16>
    %13 = vector.shape_cast %12 : vector<1x4x384xbf16> to vector<4x384xbf16>
    %14 = arith.extf %13 : vector<4x384xbf16> to vector<4x384xf32>
    %c12 = arith.constant 12 : index
    %c0_12 = arith.constant 0 : index
    %15 = vector.load %arg5[%c12, %c0_12] : memref<36x384xf32, #tpu.memory_space<vmem>>, vector<4x384xf32>
    tpu.vector_store %arg5[%c12, %c0_12], %14 {strides = array<i32>} : memref<36x384xf32, #tpu.memory_space<vmem>>, vector<4x384xf32>,
    %c0_13 = arith.constant 0 : index
    %c0_14 = arith.constant 0 : index
    %c19 = arith.constant 19 : index
    %16 = vector.load %arg3[%c0_13, %c0_14, %c19] : memref<1x4x432xbf16, #tpu.memory_space<vmem>>, vector<1x4x384xbf16>
    %17 = vector.shape_cast %16 : vector<1x4x384xbf16> to vector<4x384xbf16>
    %18 = arith.extf %17 : vector<4x384xbf16> to vector<4x384xf32>
    %c16 = arith.constant 16 : index
    %c0_15 = arith.constant 0 : index
    %19 = vector.load %arg5[%c16, %c0_15] : memref<36x384xf32, #tpu.memory_space<vmem>>, vector<4x384xf32>
    tpu.vector_store %arg5[%c16, %c0_15], %18 {strides = array<i32>} : memref<36x384xf32, #tpu.memory_space<vmem>>, vector<4x384xf32>,
    %c0_16 = arith.constant 0 : index
    %c0_17 = arith.constant 0 : index
    %c20 = arith.constant 20 : index
    %20 = vector.load %arg3[%c0_16, %c0_17, %c20] : memref<1x4x432xbf16, #tpu.memory_space<vmem>>, vector<1x4x384xbf16>
    %21 = vector.shape_cast %20 : vector<1x4x384xbf16> to vector<4x384xbf16>
    %22 = arith.extf %21 : vector<4x384xbf16> to vector<4x384xf32>
    %c20_18 = arith.constant 20 : index
    %c0_19 = arith.constant 0 : index
    %23 = vector.load %arg5[%c20_18, %c0_19] : memref<36x384xf32, #tpu.memory_space<vmem>>, vector<4x384xf32>
    tpu.vector_store %arg5[%c20_18, %c0_19], %22 {strides = array<i32>} : memref<36x384xf32, #tpu.memory_space<vmem>>, vector<4x384xf32>,
    %c0_20 = arith.constant 0 : index
    %c0_21 = arith.constant 0 : index
    %c36 = arith.constant 36 : index
    %24 = vector.load %arg3[%c0_20, %c0_21, %c36] : memref<1x4x432xbf16, #tpu.memory_space<vmem>>, vector<1x4x384xbf16>
    %25 = vector.shape_cast %24 : vector<1x4x384xbf16> to vector<4x384xbf16>
    %26 = arith.extf %25 : vector<4x384xbf16> to vector<4x384xf32>
    %c24 = arith.constant 24 : index
    %c0_22 = arith.constant 0 : index
    %27 = vector.load %arg5[%c24, %c0_22] : memref<36x384xf32, #tpu.memory_space<vmem>>, vector<4x384xf32>
    tpu.vector_store %arg5[%c24, %c0_22], %26 {strides = array<i32>} : memref<36x384xf32, #tpu.memory_space<vmem>>, vector<4x384xf32>,
    %c0_23 = arith.constant 0 : index
    %c0_24 = arith.constant 0 : index
    %c37 = arith.constant 37 : index
    %28 = vector.load %arg3[%c0_23, %c0_24, %c37] : memref<1x4x432xbf16, #tpu.memory_space<vmem>>, vector<1x4x384xbf16>
    %29 = vector.shape_cast %28 : vector<1x4x384xbf16> to vector<4x384xbf16>
    %30 = arith.extf %29 : vector<4x384xbf16> to vector<4x384xf32>
    %c28 = arith.constant 28 : index
    %c0_25 = arith.constant 0 : index
    %31 = vector.load %arg5[%c28, %c0_25] : memref<36x384xf32, #tpu.memory_space<vmem>>, vector<4x384xf32>
    tpu.vector_store %arg5[%c28, %c0_25], %30 {strides = array<i32>} : memref<36x384xf32, #tpu.memory_space<vmem>>, vector<4x384xf32>,
    %c0_26 = arith.constant 0 : index
    %c0_27 = arith.constant 0 : index
    %c38 = arith.constant 38 : index
    %32 = vector.load %arg3[%c0_26, %c0_27, %c38] : memref<1x4x432xbf16, #tpu.memory_space<vmem>>, vector<1x4x384xbf16>
    %33 = vector.shape_cast %32 : vector<1x4x384xbf16> to vector<4x384xbf16>
    %34 = arith.extf %33 : vector<4x384xbf16> to vector<4x384xf32>
    %c32 = arith.constant 32 : index
    %c0_28 = arith.constant 0 : index
    %35 = vector.load %arg5[%c32, %c0_28] : memref<36x384xf32, #tpu.memory_space<vmem>>, vector<4x384xf32>
    tpu.vector_store %arg5[%c32, %c0_28], %34 {strides = array<i32>} : memref<36x384xf32, #tpu.memory_space<vmem>>, vector<4x384xf32>,
    %c0_29 = arith.constant 0 : index
    %c0_30 = arith.constant 0 : index
    %36 = vector.load %arg5[%c0_29, %c0_30] : memref<36x384xf32, #tpu.memory_space<vmem>>, vector<36x384xf32>
    %37 = arith.truncf %36 : vector<36x384xf32> to vector<36x384xbf16>
    %c0_31 = arith.constant 0 : index
    %c0_32 = arith.constant 0 : index
    %38 = vector.load %arg1[%c0_31, %c0_32] : memref<8x36xbf16, #tpu.memory_space<vmem>>, vector<8x36xbf16>
    %cst = arith.constant dense<0.000000e+00> : vector<8x384xf32>
    %39 = tpu.matmul %38, %37, %cst {dimension_numbers = #tpu.dot_dimension_numbers<[1], [0], [0], [1], [0, 0, 1, 1], [], []>} : vector<8x36xbf16>, vector<36x384xbf16>, vector<8x384xf32> -> vector<8x384xf32>
    %c0_33 = arith.constant 0 : index
    %c0_34 = arith.constant 0 : index
    %40 = vector.load %arg2[%c0_33, %c0_34] : memref<8x1xf32, #tpu.memory_space<vmem>>, vector<8x1xf32>
    %41 = vector.broadcast %40 : vector<8x1xf32> to vector<8x384xf32>
    %42 = arith.addf %39, %41 : vector<8x384xf32>
    %c0_35 = arith.constant 0 : index
    %c0_36 = arith.constant 0 : index
    %c0_37 = arith.constant 0 : index
    %43 = vector.load %arg4[%c0_35, %c0_36, %c0_37] : memref<1x8x384xf32, #tpu.memory_space<vmem>>, vector<1x8x384xf32>
    %44 = vector.shape_cast %43 : vector<1x8x384xf32> to vector<8x384xf32>
    %45 = vector.shape_cast %42 : vector<8x384xf32> to vector<1x8x384xf32>
    tpu.vector_store %arg4[%c0_35, %c0_36, %c0_37], %45 {strides = array<i32>} : memref<1x8x384xf32, #tpu.memory_space<vmem>>, vector<1x8x384xf32>,
    return
  }
  func.func @transform_0(%arg0: i32) -> (i32, i32) {
    %c0_i32 = arith.constant 0 : i32
    %c0_i32_0 = arith.constant 0 : i32
    %c0_i32_1 = arith.constant 0 : i32
    return %c0_i32, %c0_i32_0 : i32, i32
  }
  func.func @transform_1(%arg0: i32) -> (i32, i32) {
    %c0_i32 = arith.constant 0 : i32
    %c0_i32_0 = arith.constant 0 : i32
    %c0_i32_1 = arith.constant 0 : i32
    return %c0_i32, %c0_i32_0 : i32, i32
  }
  func.func @transform_2(%arg0: i32) -> (i32, i32, i32) {
    %c0_i32 = arith.constant 0 : i32
    %c0_i32_0 = arith.constant 0 : i32
    %c0_i32_1 = arith.constant 0 : i32
    return %arg0, %c0_i32, %c0_i32_0 : i32, i32, i32
  }
  func.func @transform_3(%arg0: i32) -> (i32, i32, i32) {
    %c0_i32 = arith.constant 0 : i32
    %c0_i32_0 = arith.constant 0 : i32
    %c0_i32_1 = arith.constant 0 : i32
    return %arg0, %c0_i32, %c0_i32_0 : i32, i32, i32
  }
}

</mosaic_0001>

<llo_original>
// kernel: tpu_custom_call.1
$region0: #{tpu_custom_call.1}
  #allocation0 [shape = 'u32[]', space=smem, size = 0x4, offset = 0x4, fixed_abs, tag = 'smem constant byte address 0x4 - core index']
  #allocation1 [shape = 'u32[144,128]{1,0:T(1,128)}', space=vmem, size = 0x12000, scoped, tag = 'internal scratch']
  #allocation2 [shape = 'f32[36,384]{1,0:T(8,128)}', space=vmem, size = 0xf000, scoped, tag = 'scratch operand']
  %s0 = inlined_call_operand.hbm [shape: bf16[8,36], index: 0, kind: input, shape index: {}]
  %s1 = inlined_call_operand.vmem [shape: f32[8,1], index: 1, kind: input, shape index: {}]
  %s2 = inlined_call_operand.vmem [shape: bf16[2,4,432], index: 2, kind: input, shape index: {}]
  %s3 = inlined_call_operand.hbm [shape: f32[2,8,384], index: 3, kind: output, shape index: {}]
  %s4 = sld [smem:[#allocation0]]
  $region49: #{tpu_custom_call.1} parent=0
    _
  %s6 = ssub.s32 1, %s4
  %s7 = scalar_select 0, %s6, %s4
  $region1: #{tpu_custom_call.1} parent=0
    #allocation3 [shape = 'u8[2048]{0}', space=vmem, size = 0x800, scoped, tag = 'input window, operand 0, single buffered']
    #allocation4 [shape = 's32[2]{0}', space=sflag, size = 0x8, scoped, tag = 'scoped memory for tpu_custom_call.1']
    #allocation5 [shape = 's32[2]{0}', space=sflag, size = 0x8, scoped, tag = 'scoped memory for tpu_custom_call.1']
    #allocation6 [shape = 'u8[24576]{0}', space=vmem, size = 0x6000, scoped, tag = 'output window, operand 0']
    %8 = vsyncpa [#allocation4], 0
    %9 = vsyncpa [#allocation5], 0
    %s10 = scalar_lea.sflag [#allocation5], 1
    %11 = vsyncpa %s10, 0
    loop: start=0, step=1, limit=4
    $region2: #{tpu_custom_call.1} parent=1 // loop_pre_header
      _
    $region3: #{tpu_custom_call.1} parent=1 // loop_header
      %s13 = sphi 0, %s17
      %p14 = scmp.ge.s32.totalorder %s13, 4
      %s21 = sphi 0, %s21
      %s23 = sphi 0, %s21
      %s24 = sphi 0, %s23
      %s38 = sphi 0, %s24
      %s42 = sphi 0, %s42
      %s44 = sphi 0, %s42
      %s45 = sphi 0, %s44
      %s59 = sphi 0, %s45
      %s65 = sphi 0, %s67
      %s68 = sphi 0, %s65
      %s69 = sphi 0, %s68
      %s85 = sphi 0, %s69
      %s91 = sphi 0, %s93
      %s94 = sphi 0, %s91
      %s95 = sphi 0, %s94
      %s111 = sphi 0, %s95
    $region4: #{tpu_custom_call.1} parent=1 // loop_header_branch
      %16 = sbr.rel (%p14) target = $region8
    $region5: #{tpu_custom_call.1} parent=1 // loop_body
      %s18 = ssub.s32 %s13, 1
      %s19 = ssub.s32 %s13, 2
      %s20 = sadd.s32 %s13, 1
      %s22 = sadd.s32 %s21, 1
      %p25 = scmp.eq.s32.totalorder %s13, 1
      %p26 = scmp.ne.s32.totalorder %s21, %s23
      %p27 = scmp.eq.s32.totalorder %s13, 0
      %p28 = por %p26, %p27
      %p29 = scmp.ne.s32.totalorder %s21, %s23
      %p30 = scmp.eq.s32.totalorder %s18, 1
      %p31 = por %p29, %p30
      %p32 = scmp.ne.s32.totalorder %s23, %s24
      %p33 = scmp.eq.s32.totalorder %s18, 0
      %p34 = por %p32, %p33
      %p35 = scmp.ne.s32.totalorder %s23, %s24
      %p36 = scmp.eq.s32.totalorder %s19, 1
      %p37 = por %p35, %p36
      %p39 = scmp.ne.s32.totalorder %s24, %s38
      %p40 = scmp.eq.s32.totalorder %s19, 0
      %p41 = por %p39, %p40
      %s43 = sadd.s32 %s42, 1
      %p46 = scmp.eq.s32.totalorder %s13, 1
      %p47 = scmp.ne.s32.totalorder %s42, %s44
      %p48 = scmp.eq.s32.totalorder %s13, 0
      %p49 = por %p47, %p48
      %p50 = scmp.ne.s32.totalorder %s42, %s44
      %p51 = scmp.eq.s32.totalorder %s18, 1
      %p52 = por %p50, %p51
      %p53 = scmp.ne.s32.totalorder %s44, %s45
      %p54 = scmp.eq.s32.totalorder %s18, 0
      %p55 = por %p53, %p54
      %p56 = scmp.ne.s32.totalorder %s44, %s45
      %p57 = scmp.eq.s32.totalorder %s19, 1
      %p58 = por %p56, %p57
      %p60 = scmp.ne.s32.totalorder %s45, %s59
      %p61 = scmp.eq.s32.totalorder %s19, 0
      %p62 = por %p60, %p61
      %s63 = ssub.s32 %s13, %s20
      %p64 = scmp.eq.s32.totalorder %s63, 0
      %s66 = sadd.s32 %s65, 1
      %s67 = scalar_select %p64, %s65, %s66
      %p70 = pneg %p64
      %p71 = scmp.eq.s32.totalorder %s13, 1
      %p72 = por %p70, %p71
      %p73 = scmp.ne.s32.totalorder %s65, %s68
      %p74 = scmp.eq.s32.totalorder %s13, 0
      %p75 = por %p73, %p74
      %p76 = scmp.ne.s32.totalorder %s65, %s68
      %p77 = scmp.eq.s32.totalorder %s18, 1
      %p78 = por %p76, %p77
      %p79 = scmp.ne.s32.totalorder %s68, %s69
      %p80 = scmp.eq.s32.totalorder %s18, 0
      %p81 = por %p79, %p80
      %p82 = scmp.ne.s32.totalorder %s68, %s69
      %p83 = scmp.eq.s32.totalorder %s19, 1
      %p84 = por %p82, %p83
      %p86 = scmp.ne.s32.totalorder %s69, %s85
      %p87 = scmp.eq.s32.totalorder %s19, 0
      %p88 = por %p86, %p87
      %s89 = ssub.s32 %s13, %s20
      %p90 = scmp.eq.s32.totalorder %s89, 0
      %s92 = sadd.s32 %s91, 1
      %s93 = scalar_select %p90, %s91, %s92
      %p96 = pneg %p90
      %p97 = scmp.eq.s32.totalorder %s13, 1
      %p98 = por %p96, %p97
      %p99 = scmp.ne.s32.totalorder %s91, %s94
      %p100 = scmp.eq.s32.totalorder %s13, 0
      %p101 = por %p99, %p100
      %p102 = scmp.ne.s32.totalorder %s91, %s94
      %p103 = scmp.eq.s32.totalorder %s18, 1
      %p104 = por %p102, %p103
      %p105 = scmp.ne.s32.totalorder %s94, %s95
      %p106 = scmp.eq.s32.totalorder %s18, 0
      %p107 = por %p105, %p106
      %p108 = scmp.ne.s32.totalorder %s94, %s95
      %p109 = scmp.eq.s32.totalorder %s19, 1
      %p110 = por %p108, %p109
      %p112 = scmp.ne.s32.totalorder %s95, %s111
      %p113 = scmp.eq.s32.totalorder %s19, 0
      %p114 = por %p112, %p113
      %p115 = scmp.le.s32.totalorder 1, %s13
      %p116 = scmp.lt.s32.totalorder %s13, 3
      %p117 = pnand %p115, %p116
      %p118 = pneg %p117
      // Predicated region
      $region9: #{tpu_custom_call.1} parent=5 // pred_check
        _
      $region10: #{tpu_custom_call.1} parent=5 // pred_check_branch
        %120 = sbr.rel (%p117) target = $region12
      $region11: #{tpu_custom_call.1} parent=5 // pred_region
        %s121 = ssub.s32 %s13, 1
        // Predicated region
        $region13: #{tpu_custom_call.1} parent=11 // pred_check
          %p122 = pneg %p34
        $region14: #{tpu_custom_call.1} parent=11 // pred_check_branch
          %124 = sbr.rel (%p122) target = $region16
        $region15: #{tpu_custom_call.1} parent=11 // pred_region
          %s126 = ssub.s32 64, 64
          %127 = vsyncadd [#allocation4], %s126
          %s129 = sshll.u32 [#allocation3], 4
          %s130 = int_to_ptr.vmem [resolvable:$true] %s129
          %132 = dma.hbm_to_vmem [thread:$0]  %s0, 64, %s130, [#allocation4]
        $region16: #{tpu_custom_call.1} parent=11 // pred_fallthru
          _
        // Predicated region
        $region17: #{tpu_custom_call.1} parent=11 // pred_check
          %p133 = pneg %p55
        $region18: #{tpu_custom_call.1} parent=11 // pred_check_branch
          %135 = sbr.rel (%p133) target = $region20
        $region19: #{tpu_custom_call.1} parent=11 // pred_region
          _
        $region20: #{tpu_custom_call.1} parent=11 // pred_fallthru
          _
      $region12: #{tpu_custom_call.1} parent=5 // pred_fallthru
        _
      %p136 = scmp.lt.s32.totalorder %s13, 2
      // Predicated region
      $region21: #{tpu_custom_call.1} parent=5 // pred_check
        %p137 = pneg %p136
      $region22: #{tpu_custom_call.1} parent=5 // pred_check_branch
        %139 = sbr.rel (%p137) target = $region24
      $region23: #{tpu_custom_call.1} parent=5 // pred_region
        // Predicated region
        $region25: #{tpu_custom_call.1} parent=23 // pred_check
          %p140 = pneg %p75
        $region26: #{tpu_custom_call.1} parent=23 // pred_check_branch
          %142 = sbr.rel (%p140) target = $region28
        $region27: #{tpu_custom_call.1} parent=23 // pred_region
          %p143 = scmp.lt.s32.totalorder %s13, 1
          %s144 = scalar_select %p143, %s13, 1
          %s145 = smul.addr %s144, 4
          %s146 = smul.addr %s145, 2
          %s147 = scalar_lea.vmem %s2, %s146
        $region28: #{tpu_custom_call.1} parent=23 // pred_fallthru
          _
      $region24: #{tpu_custom_call.1} parent=5 // pred_fallthru
        _
      %p148 = scmp.le.s32.totalorder 1, %s13
      %p149 = scmp.lt.s32.totalorder %s13, 3
      %p150 = pnand %p148, %p149
      %p151 = pneg %p150
      // Predicated region
      $region29: #{tpu_custom_call.1} parent=5 // pred_check
        _
      $region30: #{tpu_custom_call.1} parent=5 // pred_check_branch
        %153 = sbr.rel (%p150) target = $region32
      $region31: #{tpu_custom_call.1} parent=5 // pred_region
        %s154 = ssub.s32 %s13, 1
        // Predicated region
        $region33: #{tpu_custom_call.1} parent=31 // pred_check
          %p155 = pneg %p34
        $region34: #{tpu_custom_call.1} parent=31 // pred_check_branch
          %157 = sbr.rel (%p155) target = $region36
        $region35: #{tpu_custom_call.1} parent=31 // pred_region
          %158 = dma.done [#allocation4], 64
        $region36: #{tpu_custom_call.1} parent=31 // pred_fallthru
          _
        %p159 = pneg %p34
        %p160 = pneg %p31
        %p161 = pneg %p55
        %p162 = pneg %p52
        %p163 = scmp.lt.s32.totalorder %s18, 1
        %s164 = scalar_select %p163, %s18, 1
        %s165 = smul.addr %s164, 4
        %s166 = smul.addr %s165, 2
        %s167 = scalar_lea.vmem %s2, %s166
        %p168 = pneg %p81
        %p169 = pneg %p78
        %p170 = pneg %p107
        %p171 = pneg %p104
        %s172 = sand.u32 %s94, 1
        %s173 = scalar_lea.sflag [#allocation5], %s172
        %s174 = sand.u32 %s94, 1
        %s175 = smul.addr %s174, 24
        %s176 = scalar_lea.vmem [#allocation6], %s175
        %p177 = scmp.lt.s32.totalorder %s18, 1
        %s178 = scalar_select %p177, %s18, 1
        %s179 = smul.addr %s178, 4
        %s180 = smul.addr %s179, 2
        %s181 = scalar_lea.vmem %s2, %s180
        %v183 = vld [vmem:[%s181] sm:$0x3f]
        %v184 = vunpack.c.l.bf16 %v183
        %v185 = vunpack.c.h.bf16 %v183
        %v187 = vcombine.high %v184, %v184
        %189 = vst [vmem:[#allocation2] sm:$0xf] %v184
        %190 = vst [vmem:[#allocation2 + $0x8] sm:$0xf] %v187
        %191 = vst [vmem:[#allocation2 + $0x10] sm:$0xf] %v185
        %v192 = vld [vmem:[%s181] sm:$0xff]
        %v193 = vunpack.c.l.bf16 %v192
        %v194 = vunpack.c.h.bf16 %v192
        %v197 = vcombine.low %v193, %v193
        %v198 = vcombine.low %v194, %v194
        %199 = vrot.lane.b32.xlu0 %v197, 127
        %v200 = vpop.permute.xlu0 %199
        %201 = vrot.lane.b32.xlu0 %v193, 127
        %v202 = vpop.permute.xlu0 %201
        %203 = vrot.lane.b32.xlu0 %v198, 127
        %v204 = vpop.permute.xlu0 %203
        %205 = vrot.lane.b32.xlu0 %v194, 127
        %v206 = vpop.permute.xlu0 %205
        %vm207 = vcmask 1039360
        %v208 = vsel %vm207, %v200, %v202
        %v209 = vsel %vm207, %v202, %v204
        %v210 = vsel %vm207, %v204, %v206
        %214 = vst [vmem:[#allocation2] sm:$0xf0] %v208
        %215 = vst [vmem:[#allocation2 + $0x8] sm:$0xf0] %v209
        %216 = vst [vmem:[#allocation2 + $0x10] sm:$0xf0] %v210
        %v217 = vld [vmem:[%s181] sm:$0xff]
        %v218 = vunpack.c.l.bf16 %v217
        %v219 = vunpack.c.h.bf16 %v217
        %v222 = vcombine.high %v218, %v218
        %v223 = vcombine.high %v219, %v219
        %224 = vrot.lane.b32.xlu0 %v218, 126
        %v225 = vpop.permute.xlu0 %224
        %226 = vrot.lane.b32.xlu0 %v222, 126
        %v227 = vpop.permute.xlu0 %226
        %228 = vrot.lane.b32.xlu0 %v219, 126
        %v229 = vpop.permute.xlu0 %228
        %230 = vrot.lane.b32.xlu0 %v223, 126
        %v231 = vpop.permute.xlu0 %230
        %vm232 = vcmask 1031168
        %v233 = vsel %vm232, %v225, %v227
        %v234 = vsel %vm232, %v227, %v229
        %v235 = vsel %vm232, %v229, %v231
        %239 = vst [vmem:[#allocation2 + $0x18] sm:$0xf] %v233
        %240 = vst [vmem:[#allocation2 + $0x20] sm:$0xf] %v234
        %241 = vst [vmem:[#allocation2 + $0x28] sm:$0xf] %v235
        %v242 = vld [vmem:[%s181] sm:$0xff]
        %v243 = vunpack.c.l.bf16 %v242
        %v244 = vunpack.c.h.bf16 %v242
        %v247 = vcombine.low %v243, %v243
        %v248 = vcombine.low %v244, %v244
        %249 = vrot.lane.b32.xlu0 %v247, 110
        %v250 = vpop.permute.xlu0 %249
        %251 = vrot.lane.b32.xlu0 %v243, 110
        %v252 = vpop.permute.xlu0 %251
        %253 = vrot.lane.b32.xlu0 %v248, 110
        %v254 = vpop.permute.xlu0 %253
        %255 = vrot.lane.b32.xlu0 %v244, 110
        %v256 = vpop.permute.xlu0 %255
        %vm257 = vcmask 900096
        %v258 = vsel %vm257, %v250, %v252
        %v259 = vsel %vm257, %v252, %v254
        %v260 = vsel %vm257, %v254, %v256
        %264 = vst [vmem:[#allocation2 + $0x18] sm:$0xf0] %v258
        %265 = vst [vmem:[#allocation2 + $0x20] sm:$0xf0] %v259
        %266 = vst [vmem:[#allocation2 + $0x28] sm:$0xf0] %v260
        %v267 = vld [vmem:[%s181] sm:$0xff]
        %v268 = vunpack.c.l.bf16 %v267
        %v269 = vunpack.c.h.bf16 %v267
        %v272 = vcombine.high %v268, %v268
        %v273 = vcombine.high %v269, %v269
        %274 = vrot.lane.b32.xlu0 %v268, 109
        %v275 = vpop.permute.xlu0 %274
        %276 = vrot.lane.b32.xlu0 %v272, 109
        %v277 = vpop.permute.xlu0 %276
        %278 = vrot.lane.b32.xlu0 %v269, 109
        %v279 = vpop.permute.xlu0 %278
        %280 = vrot.lane.b32.xlu0 %v273, 109
        %v281 = vpop.permute.xlu0 %280
        %vm282 = vcmask 891904
        %v283 = vsel %vm282, %v275, %v277
        %v284 = vsel %vm282, %v277, %v279
        %v285 = vsel %vm282, %v279, %v281
        %289 = vst [vmem:[#allocation2 + $0x30] sm:$0xf] %v283
        %290 = vst [vmem:[#allocation2 + $0x38] sm:$0xf] %v284
        %291 = vst [vmem:[#allocation2 + $0x40] sm:$0xf] %v285
        %v292 = vld [vmem:[%s181] sm:$0xff]
        %v293 = vunpack.c.l.bf16 %v292
        %v294 = vunpack.c.h.bf16 %v292
        %v297 = vcombine.low %v293, %v293
        %v298 = vcombine.low %v294, %v294
        %299 = vrot.lane.b32.xlu0 %v297, 108
        %v300 = vpop.permute.xlu0 %299
        %301 = vrot.lane.b32.xlu0 %v293, 108
        %v302 = vpop.permute.xlu0 %301
        %303 = vrot.lane.b32.xlu0 %v298, 108
        %v304 = vpop.permute.xlu0 %303
        %305 = vrot.lane.b32.xlu0 %v294, 108
        %v306 = vpop.permute.xlu0 %305
        %vm307 = vcmask 883712
        %v308 = vsel %vm307, %v300, %v302
        %v309 = vsel %vm307, %v302, %v304
        %v310 = vsel %vm307, %v304, %v306
        %314 = vst [vmem:[#allocation2 + $0x30] sm:$0xf0] %v308
        %315 = vst [vmem:[#allocation2 + $0x38] sm:$0xf0] %v309
        %316 = vst [vmem:[#allocation2 + $0x40] sm:$0xf0] %v310
        %v317 = vld [vmem:[%s181] sm:$0xff]
        %v318 = vunpack.c.l.bf16 %v317
        %v319 = vunpack.c.h.bf16 %v317
        %v322 = vcombine.high %v318, %v318
        %v323 = vcombine.high %v319, %v319
        %324 = vrot.lane.b32.xlu0 %v318, 92
        %v325 = vpop.permute.xlu0 %324
        %326 = vrot.lane.b32.xlu0 %v322, 92
        %v327 = vpop.permute.xlu0 %326
        %328 = vrot.lane.b32.xlu0 %v319, 92
        %v329 = vpop.permute.xlu0 %328
        %330 = vrot.lane.b32.xlu0 %v323, 92
        %v331 = vpop.permute.xlu0 %330
        %vm332 = vcmask 752640
        %v333 = vsel %vm332, %v325, %v327
        %v334 = vsel %vm332, %v327, %v329
        %v335 = vsel %vm332, %v329, %v331
        %339 = vst [vmem:[#allocation2 + $0x48] sm:$0xf] %v333
        %340 = vst [vmem:[#allocation2 + $0x50] sm:$0xf] %v334
        %341 = vst [vmem:[#allocation2 + $0x58] sm:$0xf] %v335
        %v342 = vld [vmem:[%s181] sm:$0xff]
        %v343 = vunpack.c.l.bf16 %v342
        %v344 = vunpack.c.h.bf16 %v342
        %v347 = vcombine.low %v343, %v343
        %v348 = vcombine.low %v344, %v344
        %349 = vrot.lane.b32.xlu0 %v347, 91
        %v350 = vpop.permute.xlu0 %349
        %351 = vrot.lane.b32.xlu0 %v343, 91
        %v352 = vpop.permute.xlu0 %351
        %353 = vrot.lane.b32.xlu0 %v348, 91
        %v354 = vpop.permute.xlu0 %353
        %355 = vrot.lane.b32.xlu0 %v344, 91
        %v356 = vpop.permute.xlu0 %355
        %vm357 = vcmask 744448
        %v358 = vsel %vm357, %v350, %v352
        %v359 = vsel %vm357, %v352, %v354
        %v360 = vsel %vm357, %v354, %v356
        %364 = vst [vmem:[#allocation2 + $0x48] sm:$0xf0] %v358
        %365 = vst [vmem:[#allocation2 + $0x50] sm:$0xf0] %v359
        %366 = vst [vmem:[#allocation2 + $0x58] sm:$0xf0] %v360
        %v367 = vld [vmem:[%s181] sm:$0xff]
        %v368 = vunpack.c.l.bf16 %v367
        %v369 = vunpack.c.h.bf16 %v367
        %v372 = vcombine.high %v368, %v368
        %v373 = vcombine.high %v369, %v369
        %374 = vrot.lane.b32.xlu0 %v368, 90
        %v375 = vpop.permute.xlu0 %374
        %376 = vrot.lane.b32.xlu0 %v372, 90
        %v377 = vpop.permute.xlu0 %376
        %378 = vrot.lane.b32.xlu0 %v369, 90
        %v379 = vpop.permute.xlu0 %378
        %380 = vrot.lane.b32.xlu0 %v373, 90
        %v381 = vpop.permute.xlu0 %380
        %vm382 = vcmask 736256
        %v383 = vsel %vm382, %v375, %v377
        %v384 = vsel %vm382, %v377, %v379
        %v385 = vsel %vm382, %v379, %v381
        %389 = vst [vmem:[#allocation2 + $0x60] sm:$0xf] %v383
        %390 = vst [vmem:[#allocation2 + $0x68] sm:$0xf] %v384
        %391 = vst [vmem:[#allocation2 + $0x70] sm:$0xf] %v385
        %v392 = vld [vmem:[#allocation2] sm:$0xff]
        %v393 = vld [vmem:[#allocation2 + $0x8] sm:$0xff]
        %v394 = vld [vmem:[#allocation2 + $0x10] sm:$0xff]
        %v395 = vld [vmem:[#allocation2 + $0x18] sm:$0xff]
        %v396 = vld [vmem:[#allocation2 + $0x20] sm:$0xff]
        %v397 = vld [vmem:[#allocation2 + $0x28] sm:$0xff]
        %v398 = vld [vmem:[#allocation2 + $0x30] sm:$0xff]
        %v399 = vld [vmem:[#allocation2 + $0x38] sm:$0xff]
        %v400 = vld [vmem:[#allocation2 + $0x40] sm:$0xff]
        %v401 = vld [vmem:[#allocation2 + $0x48] sm:$0xff]
        %v402 = vld [vmem:[#allocation2 + $0x50] sm:$0xff]
        %v403 = vld [vmem:[#allocation2 + $0x58] sm:$0xff]
        %v404 = vld [vmem:[#allocation2 + $0x60] sm:$0xf]
        %v405 = vld [vmem:[#allocation2 + $0x68] sm:$0xf]
        %v406 = vld [vmem:[#allocation2 + $0x70] sm:$0xf]
        %v407 = vpack.c.bf16 %v395, %v392
        %v408 = vpack.c.bf16 %v396, %v393
        %v409 = vpack.c.bf16 %v397, %v394
        %v410 = vpack.c.bf16 %v401, %v398
        %v411 = vpack.c.bf16 %v402, %v399
        %v412 = vpack.c.bf16 %v403, %v400
        %v413 = vpack.c.bf16 %v404, %v404
        %v414 = vpack.c.bf16 %v405, %v405
        %v415 = vpack.c.bf16 %v406, %v406
        %v416 = vld [vmem:[#allocation3] sm:$0xf]
        %v417 = vld [vmem:[%s1] sm:$0xff]
        %419 = vset.pattern.permute.xlu0 0
        %420 = vperm.xlu0 %419, %v417
        %v421 = vpop.permute.xlu0 %420
        %vm423 = vcmask 293888
        %v425 = vsel %vm423, %v416, 0
        %vm427 = vcmask 1041408
        %v429 = vsel %vm427, %v413, 0
        %v432 = vsel %vm427, %v414, 0
        %v435 = vsel %vm427, %v415, 0
        %437 = vmatprep.subr.bf16.mxu0 %v408
        %438 = vmatpush1.bf16.msra.mxu0 %v407
        %439 = vmatprep.subr.bf16.mxu0 %v411
        %440 = vmatpush1.bf16.msra.mxu0 %v410
        %441 = vmatprep.subr.bf16.mxu0 %v432
        %442 = vmatpush1.bf16.msra.mxu0 %v429
        %443 = vmatprep.subr.bf16.mxu0 0
        %444 = vmatpush1.bf16.msra.mxu0 0
        %445 = vmatprep.subr.bf16.mxu0 0
        %446 = vmatpush1.bf16.msra.mxu0 0
        %447 = vmatprep.subr.bf16.mxu0 0
        %448 = vmatpush1.bf16.msra.mxu0 0
        %449 = vmatprep.subr.bf16.mxu0 0
        %450 = vmatpush1.bf16.msra.mxu0 0
        %451 = vmatprep.subr.bf16.mxu0 0
        %452 = vmatpush1.bf16.msra.mxu0 0
        %453 = vmatprep.subr.bf16.mxu0 0
        %454 = vmatpush1.bf16.msra.mxu0 0
        %455 = vmatprep.subr.bf16.mxu0 0
        %456 = vmatpush1.bf16.msra.mxu0 0
        %457 = vmatprep.subr.bf16.mxu0 0
        %458 = vmatpush1.bf16.msra.mxu0 0
        %459 = vmatprep.subr.bf16.mxu0 0
        %460 = vmatpush1.bf16.msra.mxu0 0
        %461 = vmatprep.subr.bf16.mxu0 0
        %462 = vmatpush1.bf16.msra.mxu0 0
        %463 = vmatprep.subr.bf16.mxu0 0
        %464 = vmatpush1.bf16.msra.mxu0 0
        %465 = vmatprep.subr.bf16.mxu0 0
        %466 = vmatpush1.bf16.msra.mxu0 0
        %467 = vmatprep.subr.bf16.mxu0 0
        %468 = vmatpush1.bf16.msra.mxu0 0
        %469 = vmatprep.mubr.bf16.mxu0 0
        %470 = vmatmul.mubr.bf16.gmra.mrb[0].mxu0 %v425
        %v471 = vpop.f32.mrb[0].mxu0
        %v472 = vadd.f32 %v421, %v471
        %v473 = vpop.f32.mrb[0].mxu0
        %v474 = vadd.f32 %v421, %v473
        %v475 = vpop.f32.mrb[0].mxu0
        %v476 = vpop.f32.mrb[0].mxu0
        %477 = vdwg.mxu0
        %478 = vmatprep.subr.bf16.mxu0 0
        %479 = vmatpush1.bf16.msra.mxu0 %v409
        %480 = vmatprep.subr.bf16.mxu0 0
        %481 = vmatpush1.bf16.msra.mxu0 %v412
        %482 = vmatprep.subr.bf16.mxu0 0
        %483 = vmatpush1.bf16.msra.mxu0 %v435
        %484 = vmatprep.subr.bf16.mxu0 0
        %485 = vmatpush1.bf16.msra.mxu0 0
        %486 = vmatprep.subr.bf16.mxu0 0
        %487 = vmatpush1.bf16.msra.mxu0 0
        %488 = vmatprep.subr.bf16.mxu0 0
        %489 = vmatpush1.bf16.msra.mxu0 0
        %490 = vmatprep.subr.bf16.mxu0 0
        %491 = vmatpush1.bf16.msra.mxu0 0
        %492 = vmatprep.subr.bf16.mxu0 0
        %493 = vmatpush1.bf16.msra.mxu0 0
        %494 = vmatprep.subr.bf16.mxu0 0
        %495 = vmatpush1.bf16.msra.mxu0 0
        %496 = vmatprep.subr.bf16.mxu0 0
        %497 = vmatpush1.bf16.msra.mxu0 0
        %498 = vmatprep.subr.bf16.mxu0 0
        %499 = vmatpush1.bf16.msra.mxu0 0
        %500 = vmatprep.subr.bf16.mxu0 0
        %501 = vmatpush1.bf16.msra.mxu0 0
        %502 = vmatprep.subr.bf16.mxu0 0
        %503 = vmatpush1.bf16.msra.mxu0 0
        %504 = vmatprep.subr.bf16.mxu0 0
        %505 = vmatpush1.bf16.msra.mxu0 0
        %506 = vmatprep.subr.bf16.mxu0 0
        %507 = vmatpush1.bf16.msra.mxu0 0
        %508 = vmatprep.subr.bf16.mxu0 0
        %509 = vmatpush1.bf16.msra.mxu0 0
        %510 = vmatprep.mubr.bf16.mxu0 0
        %511 = vmatmul.mubr.bf16.gmra.mrb[0].mxu0 %v425
        %v512 = vpop.f32.mrb[0].mxu0
        %v513 = vadd.f32 %v421, %v512
        %v514 = vpop.f32.mrb[0].mxu0
        %v515 = vpop.f32.mrb[0].mxu0
        %v516 = vpop.f32.mrb[0].mxu0
        %517 = vdwg.mxu0
        %518 = vst [vmem:[%s176] sm:$0xff] %v472
        %519 = vst [vmem:[%s176 + $0x8] sm:$0xff] %v474
        %520 = vst [vmem:[%s176 + $0x10] sm:$0xff] %v513
        %s521 = sand.u32 %s94, 1
        %s522 = scalar_lea.sflag [#allocation5], %s521
        %s523 = sand.u32 %s94, 1
        %s524 = smul.addr %s523, 24
        %s525 = scalar_lea.vmem [#allocation6], %s524
        // Predicated region
        $region37: #{tpu_custom_call.1} parent=31 // pred_check
          %p526 = pneg %p104
        $region38: #{tpu_custom_call.1} parent=31 // pred_check_branch
          %528 = sbr.rel (%p526) target = $region40
        $region39: #{tpu_custom_call.1} parent=31 // pred_region
          %s530 = ssub.s32 384, 384
          %531 = vsyncadd %s522, %s530
          %s532 = smul.addr %s18, 3
          %s533 = smul.addr %s532, 128
          %s534 = scalar_lea.hbm %s3, %s533
          %s536 = sshll.u32 %s525, 4
          %s537 = int_to_ptr.vmem [resolvable:$true] %s536
          %539 = dma.vmem_to_hbm [thread:$0]  %s537, 384, %s534, %s522
        $region40: #{tpu_custom_call.1} parent=31 // pred_fallthru
          _
      $region32: #{tpu_custom_call.1} parent=5 // pred_fallthru
        _
      %p540 = scmp.le.s32.totalorder 2, %s13
      // Predicated region
      $region41: #{tpu_custom_call.1} parent=5 // pred_check
        %p541 = pneg %p540
      $region42: #{tpu_custom_call.1} parent=5 // pred_check_branch
        %543 = sbr.rel (%p541) target = $region44
      $region43: #{tpu_custom_call.1} parent=5 // pred_region
        %s544 = ssub.s32 %s13, 2
        // Predicated region
        $region45: #{tpu_custom_call.1} parent=43 // pred_check
          %p545 = pneg %p110
        $region46: #{tpu_custom_call.1} parent=43 // pred_check_branch
          %547 = sbr.rel (%p545) target = $region48
        $region47: #{tpu_custom_call.1} parent=43 // pred_region
          %s548 = sand.u32 %s95, 1
          %s549 = scalar_lea.sflag [#allocation5], %s548
          %s550 = sand.u32 %s95, 1
          %s551 = smul.addr %s550, 24
          %s552 = scalar_lea.vmem [#allocation6], %s551
          %553 = dma.done %s549, 384
        $region48: #{tpu_custom_call.1} parent=43 // pred_fallthru
          _
      $region44: #{tpu_custom_call.1} parent=5 // pred_fallthru
        _
    $region6: #{tpu_custom_call.1} parent=1 // loop_footer
      %s17 = sadd.s32 1, %s13
    $region7: #{tpu_custom_call.1} parent=1 // loop_footer_branch
      %12 = sbr.rel target = $region3
    $region8: #{tpu_custom_call.1} parent=1 // loop_exit
      _
    %554 = vsyncpa [#allocation4], 1
    %s555 = scalar_lea.sflag [#allocation4], 1
    %556 = vsyncpa %s555, 1
    %557 = vsyncpa [#allocation5], 1
    %s558 = scalar_lea.sflag [#allocation5], 1
    %559 = vsyncpa %s558, 1

</llo_original>
